<compile_context>
chip_gen: v7x
topology: tpu7x:2x2x1
jax: 0.10.0
libtpu: 0.0.40
codegen_flags: <defaults>
</compile_context>

<pallas_src>
import jax
import jax.numpy as jnp
from jax.experimental import pallas as pl
from jax.experimental.pallas import tpu as pltpu


def _round_up(x, m):
    return ((x + m - 1) // m) * m


def _pick_tile_m(M, tm_max):
    """Largest multiple of 8 that divides M and is <= tm_max (None if none exists)."""
    t = min(tm_max, M)
    t -= t % 8
    while t >= 8:
        if M % t == 0:
            return t
        t -= 8
    return None


def _patch_embed_kernel(x_ref, w_ref, b_ref, o_ref):
    # x_ref: [TM, K] bf16 patch tile (streamed), w_ref: [K, N] bf16 (resident),
    # b_ref: [1, N] f32 (resident), o_ref: [TM, N] f32.
    acc = jnp.dot(x_ref[...], w_ref[...], preferred_element_type=jnp.float32)
    o_ref[...] = (acc + b_ref[...]).astype(o_ref.dtype)


def patch_embed_matmul(patches, weight, bias2d, *, tm):
    """patches: [M, K] bf16, weight: [K, N] bf16, bias2d: [1, N] f32 -> [M, N] f32."""
    M, K = patches.shape
    K2, N = weight.shape
    assert K == K2 and M % tm == 0

    cost = pl.CostEstimate(
        flops=2 * M * K * N,
        transcendentals=0,
        bytes_accessed=2 * M * K + 2 * K * N + 4 * N + 4 * M * N,
    )

    return pl.pallas_call(
        _patch_embed_kernel,
        out_shape=jax.ShapeDtypeStruct((M, N), jnp.float32),
        grid_spec=pl.GridSpec(
            grid=(M // tm,),
            in_specs=[
                pl.BlockSpec((tm, K), lambda i: (i, 0)),   # streamed patch tile
                pl.BlockSpec((K, N), lambda i: (0, 0)),    # resident weight
                pl.BlockSpec((1, N), lambda i: (0, 0)),    # resident bias
            ],
            out_specs=pl.BlockSpec((tm, N), lambda i: (i, 0)),
        ),
        compiler_params=pltpu.CompilerParams(
            dimension_semantics=("parallel",),
            # Let XLA fuse the im2col transpose/reshape/cast producer into the
            # patch-input DMA (no separate HBM round-trip for the [M, K] patch tensor).
            allow_input_fusion=[True, False, False],
        ),
        cost_estimate=cost,
    )(patches, weight, bias2d)


def preprocessing_forward(x, conv_w, conv_b, *, tm=2048):
    """x: [B, 3, H, W] (NCHW). conv_w: [hid_dim, 3, 4, 4], conv_b: [hid_dim].

    Returns [B, (H//4)*(W//4), hid_dim] f32.
    """
    B, C, H, W = x.shape
    k = 4
    assert H % k == 0 and W % k == 0, "H and W must be divisible by the patch size 4"
    hid_dim = conv_w.shape[0]
    Hp, Wp = H // k, W // k
    M = B * Hp * Wp
    K = C * k * k

    # im2col for non-overlapping 4x4 patches, channel-major (c, kh, kw) to match
    # PyTorch's OIHW conv-weight flatten order.  bf16 inputs, f32 accumulation.
    xp = x.reshape(B, C, Hp, k, Wp, k)
    xp = jnp.transpose(xp, (0, 2, 4, 1, 3, 5))          # [B, Hp, Wp, C, k, k]
    patches = xp.reshape(M, K).astype(jnp.bfloat16)     # [M, K]

    # Prefer a tile that exactly divides M (no pad / no slice); fall back to padding.
    tile_m = _pick_tile_m(M, tm)
    if tile_m is None:
        tile_m = min(tm, _round_up(M, 8))
        M_pad = _round_up(M, tile_m)
        patches = jnp.pad(patches, ((0, M_pad - M), (0, 0)))
    else:
        M_pad = M

    w2d = conv_w.reshape(hid_dim, K).T.astype(jnp.bfloat16)         # [K, hid_dim]
    bias2d = conv_b.astype(jnp.float32).reshape(1, hid_dim)         # [1, hid_dim]

    out = patch_embed_matmul(patches, w2d, bias2d, tm=tile_m)       # [M_pad, hid_dim]
    if M_pad != M:
        out = out[:M]
    return out.reshape(B, Hp * Wp, hid_dim)                         # free reshape


if __name__ == "__main__":
    # Small shapes consistent with the module: 3 input channels, img_size=16,
    # hid_dim=32, batch=2.
    B, C, H, W = 2, 3, 16, 16
    hid_dim = 32

    key = jax.random.PRNGKey(0)
    kx, kw, kb = jax.random.split(key, 3)

    x = jax.random.normal(kx, (B, C, H, W), dtype=jnp.float32)

    # Deterministic parameter init (PyTorch-like uniform bound 1/sqrt(fan_in)).
    fan_in = C * 4 * 4
    bound = 1.0 / (fan_in ** 0.5)
    conv_w = jax.random.uniform(kw, (hid_dim, C, 4, 4), jnp.float32, -bound, bound)
    conv_b = jax.random.uniform(kb, (hid_dim,), jnp.float32, -bound, bound)

    out = preprocessing_forward(x, conv_w, conv_b)
    out = jax.block_until_ready(out)

    # Pure-JAX reference of the same conv, with inputs rounded to bf16 to match the
    # kernel's bf16-input / f32-accumulation numerics.
    xq = x.astype(jnp.bfloat16).astype(jnp.float32)
    wq = conv_w.astype(jnp.bfloat16).astype(jnp.float32)
    ref = jax.lax.conv_general_dilated(
        xq, wq, window_strides=(4, 4), padding="VALID",
        dimension_numbers=("NCHW", "OIHW", "NCHW"),
    ) + conv_b.reshape(1, hid_dim, 1, 1)
    ref = ref.reshape(B, hid_dim, -1).transpose(0, 2, 1)

    assert out.shape == (B, (H // 4) * (W // 4), hid_dim)
    assert jnp.allclose(out, ref, atol=1e-2, rtol=1e-2), float(jnp.max(jnp.abs(out - ref)))

    print("KERNEL_OK")
</pallas_src>

<mosaic_0001>
module attributes {stable_mosaic.version = 11 : i64} {
  func.func @_patch_embed_kernel(%arg0: i32, %arg1: memref<32x48xbf16, #tpu.memory_space<vmem>>, %arg2: memref<48x32xbf16, #tpu.memory_space<vmem>>, %arg3: memref<1x32xf32, #tpu.memory_space<vmem>>, %arg4: memref<32x32xf32, #tpu.memory_space<vmem>>) attributes {dimension_semantics = [#tpu.dimension_semantics<parallel>], iteration_bounds = array<i64: 1>, scalar_prefetch = 0 : i64, scratch_operands = 0 : i64, tpu.core_type = #tpu.core_type<tc>, window_params = [{transform_indices = @transform_0, window_bounds = array<i64: 32, 48>}, {pipeline_mode = #tpu.pipeline_mode<synchronous>, transform_indices = @transform_1, window_bounds = array<i64: 48, 32>}, {pipeline_mode = #tpu.pipeline_mode<synchronous>, transform_indices = @transform_2, window_bounds = array<i64: 1, 32>}, {transform_indices = @transform_3, window_bounds = array<i64: 32, 32>}]} {
    %c0 = arith.constant 0 : index
    %c0_0 = arith.constant 0 : index
    %0 = vector.load %arg1[%c0, %c0_0] : memref<32x48xbf16, #tpu.memory_space<vmem>>, vector<32x48xbf16>
    %c0_1 = arith.constant 0 : index
    %c0_2 = arith.constant 0 : index
    %1 = vector.load %arg2[%c0_1, %c0_2] : memref<48x32xbf16, #tpu.memory_space<vmem>>, vector<48x32xbf16>
    %cst = arith.constant dense<0.000000e+00> : vector<32x32xf32>
    %2 = tpu.matmul %0, %1, %cst {dimension_numbers = #tpu.dot_dimension_numbers<[1], [0], [0], [1], [0, 0, 1, 1], [], []>} : vector<32x48xbf16>, vector<48x32xbf16>, vector<32x32xf32> -> vector<32x32xf32>
    %c0_3 = arith.constant 0 : index
    %c0_4 = arith.constant 0 : index
    %3 = vector.load %arg3[%c0_3, %c0_4] : memref<1x32xf32, #tpu.memory_space<vmem>>, vector<1x32xf32>
    %4 = vector.broadcast %3 : vector<1x32xf32> to vector<32x32xf32>
    %5 = arith.addf %2, %4 : vector<32x32xf32>
    %c0_5 = arith.constant 0 : index
    %c0_6 = arith.constant 0 : index
    %6 = vector.load %arg4[%c0_5, %c0_6] : memref<32x32xf32, #tpu.memory_space<vmem>>, vector<32x32xf32>
    tpu.vector_store %arg4[%c0_5, %c0_6], %5 {strides = array<i32>} : memref<32x32xf32, #tpu.memory_space<vmem>>, vector<32x32xf32>,
    return
  }
  func.func @transform_0(%arg0: i32) -> (i32, i32) {
    %c0_i32 = arith.constant 0 : i32
    %c0_i32_0 = arith.constant 0 : i32
    return %arg0, %c0_i32 : i32, i32
  }
  func.func @transform_1(%arg0: i32) -> (i32, i32) {
    %c0_i32 = arith.constant 0 : i32
    %c0_i32_0 = arith.constant 0 : i32
    %c0_i32_1 = arith.constant 0 : i32
    return %c0_i32, %c0_i32_0 : i32, i32
  }
  func.func @transform_2(%arg0: i32) -> (i32, i32) {
    %c0_i32 = arith.constant 0 : i32
    %c0_i32_0 = arith.constant 0 : i32
    %c0_i32_1 = arith.constant 0 : i32
    return %c0_i32, %c0_i32_0 : i32, i32
  }
  func.func @transform_3(%arg0: i32) -> (i32, i32) {
    %c0_i32 = arith.constant 0 : i32
    %c0_i32_0 = arith.constant 0 : i32
    return %arg0, %c0_i32 : i32, i32
  }
}

</mosaic_0001>

<llo_original>
// kernel: tpu_custom_call.1
$region0: #{tpu_custom_call.1}
  #allocation0 [shape = 'u32[]', space=smem, size = 0x4, offset = 0x4, fixed_abs, tag = 'smem constant byte address 0x4 - core index']
  #allocation1 [shape = 'u32[144,128]{1,0:T(1,128)}', space=vmem, size = 0x12000, scoped, tag = 'internal scratch']
  %s0 = inlined_call_operand.vmem [shape: bf16[32,48], index: 0, kind: input, shape index: {}]
  %s1 = inlined_call_operand.vmem [shape: bf16[48,32], index: 1, kind: input, shape index: {}]
  %s2 = inlined_call_operand.vmem [shape: f32[1,32], index: 2, kind: input, shape index: {}]
  %s3 = inlined_call_operand.hbm [shape: f32[32,32], index: 3, kind: output, shape index: {}]
  %s4 = sld [smem:[#allocation0]]
  $region22: #{tpu_custom_call.1} parent=0
    _
  %s6 = ssub.s32 1, %s4
  %s7 = scalar_select 0, %s6, %s4
  $region1: #{tpu_custom_call.1} parent=0
    #allocation2 [shape = 'u8[16384]{0}', space=vmem, size = 0x4000, scoped, tag = 'output window, operand 0, single buffered']
    #allocation3 [shape = 's32[1]{0}', space=sflag, size = 0x4, scoped, tag = 'scoped memory for tpu_custom_call.1']
    %8 = vsyncpa [#allocation3], 0
    // Predicated region
    $region2: #{tpu_custom_call.1} parent=1 // pred_check
      _
    $region3: #{tpu_custom_call.1} parent=1 // pred_check_branch
      %10 = sbr.rel (0) target = $region5
    $region4: #{tpu_custom_call.1} parent=1 // pred_region
      _
    $region5: #{tpu_custom_call.1} parent=1 // pred_fallthru
      _
    // Predicated region
    $region6: #{tpu_custom_call.1} parent=1 // pred_check
      _
    $region7: #{tpu_custom_call.1} parent=1 // pred_check_branch
      %12 = sbr.rel (0) target = $region9
    $region8: #{tpu_custom_call.1} parent=1 // pred_region
      _
    $region9: #{tpu_custom_call.1} parent=1 // pred_fallthru
      _
    // Predicated region
    $region10: #{tpu_custom_call.1} parent=1 // pred_check
      _
    $region11: #{tpu_custom_call.1} parent=1 // pred_check_branch
      %14 = sbr.rel (0) target = $region13
    $region12: #{tpu_custom_call.1} parent=1 // pred_region
      _
    $region13: #{tpu_custom_call.1} parent=1 // pred_fallthru
      _
    %v16 = vld [vmem:[%s0] sm:$0xf]
    %v17 = vld [vmem:[%s0 + $0x4] sm:$0xf]
    %v18 = vld [vmem:[%s0 + $0x8] sm:$0xf]
    %v19 = vld [vmem:[%s0 + $0xc] sm:$0xf]
    %v20 = vld [vmem:[%s1] sm:$0xf]
    %v21 = vld [vmem:[%s1 + $0x4] sm:$0xf]
    %v22 = vld [vmem:[%s1 + $0x8] sm:$0xf]
    %v23 = vld [vmem:[%s1 + $0xc] sm:$0xf]
    %v24 = vld [vmem:[%s1 + $0x10] sm:$0xf]
    %v25 = vld [vmem:[%s1 + $0x14] sm:$0xf]
    %v26 = vld [vmem:[%s2] sm:$0x1]
    %v28 = vlaneseq
    %v29 = vshrl.u32 %v28, 7
    %v30 = vsub.s32 0, %v29
    %v31 = vrot.slane %v26, %v30
    %v37 = vunpack.c.l.b16 %v16
    %v38 = vunpack.c.l.b16 %v17
    %v39 = vunpack.c.l.b16 %v18
    %v40 = vunpack.c.l.b16 %v19
    %v41 = vpack.c.b16 %v38, %v37
    %v42 = vpack.c.b16 %v40, %v39
    %v49 = vunpack.c.l.b16 %v20
    %v50 = vunpack.c.l.b16 %v21
    %v51 = vunpack.c.l.b16 %v22
    %v52 = vunpack.c.l.b16 %v23
    %v53 = vunpack.c.l.b16 %v24
    %v54 = vunpack.c.l.b16 %v25
    %v55 = vpack.c.b16 %v50, %v49
    %v56 = vpack.c.b16 %v52, %v51
    %v57 = vpack.c.b16 %v54, %v53
    %vm61 = vcmask 392192
    %v63 = vsel %vm61, %v41, 0
    %v66 = vsel %vm61, %v42, 0
    %68 = vmatprep.subr.bf16.mxu0 0
    %69 = vmatpush1.bf16.msra.mxu0 %v55
    %70 = vmatprep.subr.bf16.mxu0 0
    %71 = vmatpush1.bf16.msra.mxu0 %v56
    %72 = vmatprep.subr.bf16.mxu0 0
    %73 = vmatpush1.bf16.msra.mxu0 %v57
    %74 = vmatprep.subr.bf16.mxu0 0
    %75 = vmatpush1.bf16.msra.mxu0 0
    %76 = vmatprep.subr.bf16.mxu0 0
    %77 = vmatpush1.bf16.msra.mxu0 0
    %78 = vmatprep.subr.bf16.mxu0 0
    %79 = vmatpush1.bf16.msra.mxu0 0
    %80 = vmatprep.subr.bf16.mxu0 0
    %81 = vmatpush1.bf16.msra.mxu0 0
    %82 = vmatprep.subr.bf16.mxu0 0
    %83 = vmatpush1.bf16.msra.mxu0 0
    %84 = vmatprep.subr.bf16.mxu0 0
    %85 = vmatpush1.bf16.msra.mxu0 0
    %86 = vmatprep.subr.bf16.mxu0 0
    %87 = vmatpush1.bf16.msra.mxu0 0
    %88 = vmatprep.subr.bf16.mxu0 0
    %89 = vmatpush1.bf16.msra.mxu0 0
    %90 = vmatprep.subr.bf16.mxu0 0
    %91 = vmatpush1.bf16.msra.mxu0 0
    %92 = vmatprep.subr.bf16.mxu0 0
    %93 = vmatpush1.bf16.msra.mxu0 0
    %94 = vmatprep.subr.bf16.mxu0 0
    %95 = vmatpush1.bf16.msra.mxu0 0
    %96 = vmatprep.subr.bf16.mxu0 0
    %97 = vmatpush1.bf16.msra.mxu0 0
    %98 = vmatprep.subr.bf16.mxu0 0
    %99 = vmatpush1.bf16.msra.mxu0 0
    %100 = vmatprep.mubr.bf16.mxu0 0
    %101 = vmatmul.mubr.bf16.gmra.mrb[0].mxu0 %v63
    %v102 = vpop.f32.mrb[0].mxu0
    %v103 = vadd.f32 %v31, %v102
    %v104 = vpop.f32.mrb[0].mxu0
    %v105 = vpop.f32.mrb[0].mxu0
    %v106 = vadd.f32 %v31, %v105
    %v107 = vpop.f32.mrb[0].mxu0
    %108 = vmatprep.mubr.bf16.mxu0 0
    %109 = vmatmul.mubr.bf16.gmra.mrb[0].mxu0 %v66
    %v110 = vpop.f32.mrb[0].mxu0
    %v111 = vadd.f32 %v31, %v110
    %v112 = vpop.f32.mrb[0].mxu0
    %v113 = vpop.f32.mrb[0].mxu0
    %v114 = vadd.f32 %v31, %v113
    %v115 = vpop.f32.mrb[0].mxu0
    %116 = vdwg.mxu0
    %vm117 = vcmask 261120
    %118 = vst.msk [vmem:[#allocation2] sm:$0xff] %vm117, %v103
    %119 = vst.msk [vmem:[#allocation2 + $0x8] sm:$0xff] %vm117, %v106
    %120 = vst.msk [vmem:[#allocation2 + $0x10] sm:$0xff] %vm117, %v111
    %121 = vst.msk [vmem:[#allocation2 + $0x18] sm:$0xff] %vm117, %v114
    // Predicated region
    $region14: #{tpu_custom_call.1} parent=1 // pred_check
      _
    $region15: #{tpu_custom_call.1} parent=1 // pred_check_branch
      %123 = sbr.rel (0) target = $region17
    $region16: #{tpu_custom_call.1} parent=1 // pred_region
      %s125 = ssub.s32 512, 512
      %126 = vsyncadd [#allocation3], %s125
      %s127 = sshll.u32 [#allocation2], 4
      %s128 = int_to_ptr.vmem [resolvable:$true] %s127
      %133 = dma.vmem_to_hbm [thread:$0]  %s128, 512, %s3, [#allocation3], 128, 128, 8
    $region17: #{tpu_custom_call.1} parent=1 // pred_fallthru
      _
    // Predicated region
    $region18: #{tpu_custom_call.1} parent=1 // pred_check
      _
    $region19: #{tpu_custom_call.1} parent=1 // pred_check_branch
      %135 = sbr.rel (0) target = $region21
    $region20: #{tpu_custom_call.1} parent=1 // pred_region
      %136 = dma.done [#allocation3], 512
    $region21: #{tpu_custom_call.1} parent=1 // pred_fallthru
      _
    %137 = vsyncpa [#allocation3], 1

</llo_original>
